<compile_context>
chip_gen: v6e
topology: v6e:2x2x1
jax: 0.10.0
libtpu: 0.0.40
codegen_flags: <defaults>
</compile_context>

<pallas_src>
import jax
import jax.numpy as jnp
from jax.experimental import pallas as pl
from jax.experimental.pallas import tpu as pltpu

_LANE = 128    # lane width (last dim) -> unmasked full-width stores
_SUBLANE = 8   # sublane packing for f32


def _pick_block_rows():
    """2 MiB blocks on v5e (16 MiB scoped-VMEM default), 4 MiB elsewhere."""
    try:
        kind = jax.devices()[0].device_kind.lower()
    except Exception:  # pragma: no cover - defensive fallback
        kind = ""
    if "v5" in kind:
        return 4096    # 4096 * 128 * 4 B = 2 MiB per buffer
    return 8192        # 8192 * 128 * 4 B = 4 MiB per buffer


_BLOCK_ROWS = _pick_block_rows()


def _linreg_kernel(w_ref, b_ref, x_ref, o_ref):
    # Elementwise affine map on the whole (TM, 128) tile: y = w * x + b
    w = w_ref[0]
    b = b_ref[0]
    o_ref[...] = w * x_ref[...] + b


@jax.jit
def regression_forward(x, w, b):
    """x: float32 [N]; w, b: float32 scalars (shape [1] like torch Parameters)."""
    x = jnp.asarray(x, jnp.float32).reshape(-1)
    n = x.shape[0]

    # --- sublane/lane-dense 2-D layout; pad only to a (8, 128) multiple -----
    rows = max(pl.cdiv(n, _LANE), 1)
    rows = ((rows + _SUBLANE - 1) // _SUBLANE) * _SUBLANE   # multiple of 8
    tm = min(rows, _BLOCK_ROWS)                             # block rows (mult of 8)
    padded = rows * _LANE

    xp = jnp.pad(x, (0, padded - n)).reshape(rows, _LANE)   # fused tail pad
    w1 = jnp.asarray(w, jnp.float32).reshape(1)
    b1 = jnp.asarray(b, jnp.float32).reshape(1)

    grid = (pl.cdiv(rows, tm),)                              # ragged last block OK

    out = pl.pallas_call(
        _linreg_kernel,
        out_shape=jax.ShapeDtypeStruct((rows, _LANE), jnp.float32),
        grid=grid,
        in_specs=[
            pl.BlockSpec(memory_space=pltpu.SMEM),           # w scalar
            pl.BlockSpec(memory_space=pltpu.SMEM),           # b scalar
            pl.BlockSpec((tm, _LANE), lambda i: (i, 0)),     # x tile (pipelined)
        ],
        out_specs=pl.BlockSpec((tm, _LANE), lambda i: (i, 0)),
        compiler_params=pltpu.CompilerParams(
            dimension_semantics=("parallel",)),
        cost_estimate=pl.CostEstimate(
            flops=2 * padded, transcendentals=0, bytes_accessed=8 * padded),
    )(w1, b1, xp)

    # Padded tail (never reduced over in-kernel) is sliced off here, still
    # inside the same jit so it fuses with the kernel's consumer.
    return out.reshape(-1)[:n]


if __name__ == "__main__":
    key = jax.random.PRNGKey(0)
    kw, kb = jax.random.split(key)

    # Deterministic parameter init mirroring torch.rand([1]) (uniform [0, 1))
    w = jax.random.uniform(kw, (1,), dtype=jnp.float32)
    b = jax.random.uniform(kb, (1,), dtype=jnp.float32)

    # Same tiny input the lab script uses (pads to a single (8, 128) tile)
    x_small = jnp.array([1, 5, 10, 10, 25, 50, 70, 75, 100], dtype=jnp.float32)
    y_small = regression_forward(x_small, w, b)
    jax.block_until_ready(y_small)
    ref_small = w[0] * x_small + b[0]
    assert y_small.shape == x_small.shape
    assert jnp.allclose(y_small, ref_small, atol=1e-6), (y_small, ref_small)

    # Medium vector: single block, non-trivial padding tail
    x_mid = jax.random.uniform(jax.random.PRNGKey(1), (5000,), dtype=jnp.float32) * 100.0
    y_mid = regression_forward(x_mid, w, b)
    jax.block_until_ready(y_mid)
    ref_mid = w[0] * x_mid + b[0]
    assert y_mid.shape == x_mid.shape
    assert jnp.allclose(y_mid, ref_mid, atol=1e-5), "mid-N mismatch"

    # Larger vector: exercises the multi-block / ragged-last-block grid path
    n_big = _BLOCK_ROWS * _LANE + 12345
    x_big = jax.random.uniform(jax.random.PRNGKey(2), (n_big,), dtype=jnp.float32) * 100.0
    y_big = regression_forward(x_big, w, b)
    jax.block_until_ready(y_big)
    ref_big = w[0] * x_big + b[0]
    assert y_big.shape == x_big.shape
    assert jnp.allclose(y_big, ref_big, atol=1e-5), "large-N mismatch"

    print("KERNEL_OK")
</pallas_src>

<mosaic_0001>
module attributes {stable_mosaic.version = 11 : i64} {
  func.func @_linreg_kernel(%arg0: i32, %arg1: memref<1xf32, #tpu.memory_space<smem>>, %arg2: memref<1xf32, #tpu.memory_space<smem>>, %arg3: memref<8x128xf32, #tpu.memory_space<vmem>>, %arg4: memref<8x128xf32, #tpu.memory_space<vmem>>) attributes {dimension_semantics = [#tpu.dimension_semantics<parallel>], iteration_bounds = array<i64: 1>, scalar_prefetch = 0 : i64, scratch_operands = 0 : i64, tpu.core_type = #tpu.core_type<tc>, window_params = [{transform_indices = @transform_0, window_bounds = array<i64: 1>}, {transform_indices = @transform_1, window_bounds = array<i64: 1>}, {transform_indices = @transform_2, window_bounds = array<i64: 8, 128>}, {transform_indices = @transform_3, window_bounds = array<i64: 8, 128>}]} {
    %c0 = arith.constant 0 : index
    %0 = memref.load %arg1[%c0] : memref<1xf32, #tpu.memory_space<smem>>
    %c0_0 = arith.constant 0 : index
    %1 = memref.load %arg2[%c0_0] : memref<1xf32, #tpu.memory_space<smem>>
    %c0_1 = arith.constant 0 : index
    %c0_2 = arith.constant 0 : index
    %2 = vector.load %arg3[%c0_1, %c0_2] : memref<8x128xf32, #tpu.memory_space<vmem>>, vector<8x128xf32>
    %3 = vector.broadcast %0 : f32 to vector<8x128xf32>
    %4 = arith.mulf %3, %2 : vector<8x128xf32>
    %5 = vector.broadcast %1 : f32 to vector<8x128xf32>
    %6 = arith.addf %4, %5 : vector<8x128xf32>
    %c0_3 = arith.constant 0 : index
    %c0_4 = arith.constant 0 : index
    %7 = vector.load %arg4[%c0_3, %c0_4] : memref<8x128xf32, #tpu.memory_space<vmem>>, vector<8x128xf32>
    tpu.vector_store %arg4[%c0_3, %c0_4], %6 {strides = array<i32>} : memref<8x128xf32, #tpu.memory_space<vmem>>, vector<8x128xf32>,
    return
  }
  func.func @transform_0(%arg0: i32) -> i32 {
    %c0_i32 = arith.constant 0 : i32
    %c0_i32_0 = arith.constant 0 : i32
    return %c0_i32 : i32
  }
  func.func @transform_1(%arg0: i32) -> i32 {
    %c0_i32 = arith.constant 0 : i32
    %c0_i32_0 = arith.constant 0 : i32
    return %c0_i32 : i32
  }
  func.func @transform_2(%arg0: i32) -> (i32, i32) {
    %c0_i32 = arith.constant 0 : i32
    %c0_i32_0 = arith.constant 0 : i32
    return %arg0, %c0_i32 : i32, i32
  }
  func.func @transform_3(%arg0: i32) -> (i32, i32) {
    %c0_i32 = arith.constant 0 : i32
    %c0_i32_0 = arith.constant 0 : i32
    return %arg0, %c0_i32 : i32, i32
  }
}

</mosaic_0001>

<llo_original>
// kernel: regression_forward.1
$region0: #{regression_forward.1}
  #allocation0 [shape = 'u32[]', space=smem, size = 0x4, offset = 0x4, fixed_abs, tag = 'smem constant byte address 0x4 - core index']
  #allocation1 [shape = 'u32[144,128]{1,0:T(1,128)}', space=vmem, size = 0x12000, scoped, tag = 'internal scratch']
  #allocation2 [shape = 'f32[1]{0:T(128)S(6)}', space=smem, size = 0x200, scoped, tag = 'scoped memory for regression_forward.1']
  #allocation3 [shape = 'f32[1]{0:T(128)S(6)}', space=smem, size = 0x200, scoped, tag = 'scoped memory for regression_forward.1']
  %s0 = inlined_call_operand.<no memory space> [shape: f32[1], index: 0, kind: input, shape index: {}]
  %s1 = inlined_call_operand.<no memory space> [shape: f32[1], index: 1, kind: input, shape index: {}]
  %s2 = inlined_call_operand.vmem [shape: f32[8,128], index: 2, kind: input, shape index: {}]
  %s3 = inlined_call_operand.vmem [shape: f32[8,128], index: 3, kind: output, shape index: {}]
  %s4 = sld [smem:[#allocation0]]
  $region22: #{regression_forward.1} parent=0
    _
  %s6 = ssub.s32 1, %s4
  %s7 = scalar_select 0, %s6, %s4
  %8 = sst [smem:[#allocation2]] %s0
  %9 = sst [smem:[#allocation3]] %s1
  // Predicated region
  $region2: #{regression_forward.1} parent=0 // pred_check
    _
  $region3: #{regression_forward.1} parent=0 // pred_check_branch
    %11 = sbr.rel (0) target = $region5
  $region4: #{regression_forward.1} parent=0 // pred_region
    _
  $region5: #{regression_forward.1} parent=0 // pred_fallthru
    _
  // Predicated region
  $region6: #{regression_forward.1} parent=0 // pred_check
    _
  $region7: #{regression_forward.1} parent=0 // pred_check_branch
    %13 = sbr.rel (0) target = $region9
  $region8: #{regression_forward.1} parent=0 // pred_region
    _
  $region9: #{regression_forward.1} parent=0 // pred_fallthru
    _
  // Predicated region
  $region10: #{regression_forward.1} parent=0 // pred_check
    _
  $region11: #{regression_forward.1} parent=0 // pred_check_branch
    %15 = sbr.rel (0) target = $region13
  $region12: #{regression_forward.1} parent=0 // pred_region
    _
  $region13: #{regression_forward.1} parent=0 // pred_fallthru
    _
  %s16 = sld [smem:[#allocation2]]
  %s17 = sld [smem:[#allocation3]]
  %v18 = vld [vmem:[%s2] sm:$0xff]
  %v19 = vstv %s16
  %v20 = vmul.f32 %v19, %v18
  %v21 = vstv %s17
  %v22 = vadd.f32 %v20, %v21
  %23 = vst [vmem:[%s3] sm:$0xff] %v22
  // Predicated region
  $region14: #{regression_forward.1} parent=0 // pred_check
    _
  $region15: #{regression_forward.1} parent=0 // pred_check_branch
    %25 = sbr.rel (0) target = $region17
  $region16: #{regression_forward.1} parent=0 // pred_region
    _
  $region17: #{regression_forward.1} parent=0 // pred_fallthru
    _
  // Predicated region
  $region18: #{regression_forward.1} parent=0 // pred_check
    _
  $region19: #{regression_forward.1} parent=0 // pred_check_branch
    %27 = sbr.rel (0) target = $region21
  $region20: #{regression_forward.1} parent=0 // pred_region
    _
  $region21: #{regression_forward.1} parent=0 // pred_fallthru
    _

</llo_original>
